<compile_context>
chip_gen: v7x
topology: tpu7x:2x2x1
jax: 0.10.0
libtpu: 0.0.40
codegen_flags: <defaults>
</compile_context>

<pallas_src>
import functools

import jax
import jax.numpy as jnp
from jax.experimental import pallas as pl
from jax.experimental.pallas import tpu as pltpu


def _round_up(v, m):
    return ((v + m - 1) // m) * m


def _vmem_budget_bytes(headroom_frac=0.82):
    """Per-core VMEM budget: physical capacity minus compiler headroom."""
    cap = None
    try:
        info = pltpu.get_tpu_info()
        cap = int(getattr(info, "vmem_capacity_bytes", 0)) or None
    except Exception:
        cap = None
    if cap is None:
        cap = 64 * 1024 * 1024  # conservative default (v7x per-TensorCore)
    return int(cap * headroom_frac)


def _resident_vmem_bytes(t, d_in, d_hid, w_it, x_it, o_it):
    """Estimated VMEM for the weight-resident kernel at token tile t."""
    return (4 * d_in * d_hid * w_it              # W1 + W2, double-buffered
            + 2 * t * d_in * (x_it + o_it)        # x / out tiles, double-buffered
            + t * d_hid * (4 + w_it)              # f32 hidden intermediate (+cast)
            + 2 * t * d_in * 4                    # f32 epilogue temporaries
            + 4 * (d_hid + 3 * d_in) * 4)         # bias / gamma / beta vectors


def _chunked_vmem_bytes(t, tk, d_in, w_it, x_it, o_it):
    """Estimated VMEM for the hidden-chunked fallback at (t, tk)."""
    return (4 * d_in * tk * w_it                 # W1/W2 chunks, double-buffered
            + 2 * t * d_in * (x_it + o_it)        # x / out tiles
            + t * d_in * 4                        # f32 accumulator scratch
            + t * tk * (4 + w_it)                 # hidden chunk intermediate
            + t * d_in * 4                        # f32 epilogue temporaries
            + 4 * (tk + 3 * d_in) * 4)            # bias / gamma / beta vectors


def _ffn_resident_kernel(x_ref, w1_ref, b1_ref, w2_ref, b2_ref, g_ref, beta_ref,
                         o_ref, *, eps):
    """Weights resident in VMEM; grid = (token tiles,)."""
    # TODO(synk): dropout(p=0.1) implemented as identity (inference mode);
    # training would need pltpu.prng_seed + pltpu.prng_random_bits masking.
    xv = x_ref[...]                                          # original dtype
    h = jnp.dot(xv.astype(w1_ref.dtype), w1_ref[...],
                preferred_element_type=jnp.float32)
    h = jnp.maximum(h + b1_ref[...].astype(jnp.float32), 0.0)
    y = jnp.dot(h.astype(w2_ref.dtype), w2_ref[...],
                preferred_element_type=jnp.float32)
    y = y + b2_ref[...].astype(jnp.float32) + xv.astype(jnp.float32)  # residual
    # LayerNorm over the feature (lane) axis, f32 math, eps=1e-6.
    mean = jnp.mean(y, axis=-1, keepdims=True)
    c = y - mean
    var = jnp.mean(c * c, axis=-1, keepdims=True)
    y_norm = c * jax.lax.rsqrt(var + eps)
    o_ref[...] = (y_norm * g_ref[...].astype(jnp.float32)
                  + beta_ref[...].astype(jnp.float32)).astype(o_ref.dtype)


def _ffn_chunked_kernel(x_ref, w1_ref, b1_ref, w2_ref, b2_ref, g_ref, beta_ref,
                        o_ref, acc_ref, *, eps):
    """Fallback for huge d_hid; grid = (token tiles, hidden chunks)."""
    k = pl.program_id(1)

    @pl.when(k == 0)
    def _init():
        acc_ref[...] = jnp.zeros_like(acc_ref)

    xv = x_ref[...]
    h = jnp.dot(xv.astype(w1_ref.dtype), w1_ref[...],
                preferred_element_type=jnp.float32)
    h = jnp.maximum(h + b1_ref[...].astype(jnp.float32), 0.0)
    acc_ref[...] += jnp.dot(h.astype(w2_ref.dtype), w2_ref[...],
                            preferred_element_type=jnp.float32)

    @pl.when(k == pl.num_programs(1) - 1)
    def _finalize():
        # TODO(synk): dropout(p=0.1) is identity (inference mode).
        y = acc_ref[...] + b2_ref[...].astype(jnp.float32) + xv.astype(jnp.float32)
        mean = jnp.mean(y, axis=-1, keepdims=True)
        c = y - mean
        var = jnp.mean(c * c, axis=-1, keepdims=True)
        y_norm = c * jax.lax.rsqrt(var + eps)
        o_ref[...] = (y_norm * g_ref[...].astype(jnp.float32)
                      + beta_ref[...].astype(jnp.float32)).astype(o_ref.dtype)


def positionwise_feed_forward(x, w1, b1, w2, b2, gamma, beta, *,
                              eps=1e-6, tm=512,
                              force_chunked=False, max_hidden_tile=None):
    """x: (B, S, d_in); w1: (d_in, d_hid); b1: (d_hid,); w2: (d_hid, d_in).

    Weights are consumed in the dtype they are passed in (cast them to bf16
    once at init for the fast path).  x is cast to the weight dtype inside
    the kernel; residual add + LayerNorm run in f32.
    """
    B, S, d_in = x.shape
    d_hid = w1.shape[1]
    M = B * S

    x_it = jnp.dtype(x.dtype).itemsize
    o_it = x_it
    w_it = jnp.dtype(w1.dtype).itemsize

    budget = _vmem_budget_bytes()

    # ---- Token tiling: 128-aligned; >= 2 tiles so both v7x TensorCores work.
    tm = _round_up(max(tm, 128), 128)
    if M < 256:
        tm_eff = M                       # single tile == full token axis
    else:
        tm_eff = min(tm, _round_up(pl.cdiv(M, 2), 128))

    # ---- Weight residency decision (drop the hidden grid axis when it fits).
    resident = _resident_vmem_bytes(tm_eff, d_in, d_hid, w_it, x_it, o_it) <= budget
    if not resident and M >= 256:
        for t in (256, 128):             # try a smaller token tile first
            if t < tm_eff and _resident_vmem_bytes(t, d_in, d_hid,
                                                   w_it, x_it, o_it) <= budget:
                tm_eff, resident = t, True
                break
    if force_chunked:
        resident = False

    # Small per-feature vectors: reshape only (no wrapper-side casts).
    b1_2 = b1.reshape(1, d_hid)
    b2_2 = b2.reshape(1, d_in)
    g_2 = gamma.reshape(1, d_in)
    be_2 = beta.reshape(1, d_in)

    if resident:
        M_pad = _round_up(M, tm_eff)
        x2 = x.reshape(M, d_in)
        if M_pad != M:
            x2 = jnp.pad(x2, ((0, M_pad - M), (0, 0)))

        cost = pl.CostEstimate(
            flops=4 * M_pad * d_in * d_hid + 10 * M_pad * d_in,
            transcendentals=M_pad,
            bytes_accessed=int(M_pad * d_in * (x_it + o_it)
                               + 2 * d_in * d_hid * w_it
                               + (d_hid + 3 * d_in) * 4))

        out = pl.pallas_call(
            functools.partial(_ffn_resident_kernel, eps=eps),
            out_shape=jax.ShapeDtypeStruct((M_pad, d_in), x.dtype),
            grid_spec=pltpu.PrefetchScalarGridSpec(
                num_scalar_prefetch=0,
                grid=(M_pad // tm_eff,),
                in_specs=[
                    pl.BlockSpec((tm_eff, d_in), lambda i: (i, 0)),   # x tile
                    pl.BlockSpec((d_in, d_hid), lambda i: (0, 0)),    # W1 (resident)
                    pl.BlockSpec((1, d_hid), lambda i: (0, 0)),       # b1
                    pl.BlockSpec((d_hid, d_in), lambda i: (0, 0)),    # W2 (resident)
                    pl.BlockSpec((1, d_in), lambda i: (0, 0)),        # b2
                    pl.BlockSpec((1, d_in), lambda i: (0, 0)),        # gamma
                    pl.BlockSpec((1, d_in), lambda i: (0, 0)),        # beta
                ],
                out_specs=pl.BlockSpec((tm_eff, d_in), lambda i: (i, 0)),
            ),
            compiler_params=pltpu.CompilerParams(
                dimension_semantics=("parallel",),
                vmem_limit_bytes=budget,
            ),
            cost_estimate=cost,
        )(x2, w1, b1_2, w2, b2_2, g_2, be_2)
    else:
        # ---- Hidden-chunked fallback: derive tk from the VMEM budget.
        candidates = (4096, 2048, 1024, 512, 256, 128)
        if max_hidden_tile is not None:
            candidates = tuple(c for c in candidates if c <= max_hidden_tile)
        t = tm_eff
        tk = None
        while True:
            for cand in candidates:
                if cand > _round_up(d_hid, 128):
                    continue
                if _chunked_vmem_bytes(t, cand, d_in, w_it, x_it, o_it) <= budget:
                    tk = cand
                    break
            if tk is not None or t <= 128:
                break
            t = max(128, t // 2)
        if tk is None:
            tk = 128   # last resort; may spill but still compiles
        tm_eff = t

        M_pad = _round_up(M, tm_eff)
        x2 = x.reshape(M, d_in)
        if M_pad != M:
            x2 = jnp.pad(x2, ((0, M_pad - M), (0, 0)))

        d_hid_pad = _round_up(d_hid, tk)
        w1c, w2c, b1c = w1, w2, b1_2
        if d_hid_pad != d_hid:
            # Zero-padding the hidden axis is mathematically exact
            # (relu(0)=0 contributes nothing through the zero rows of W2).
            # TODO(synk): pre-pad parameters at init if this path is hot.
            w1c = jnp.pad(w1, ((0, 0), (0, d_hid_pad - d_hid)))
            w2c = jnp.pad(w2, ((0, d_hid_pad - d_hid), (0, 0)))
            b1c = jnp.pad(b1, (0, d_hid_pad - d_hid)).reshape(1, d_hid_pad)
        nk = d_hid_pad // tk

        cost = pl.CostEstimate(
            flops=4 * M_pad * d_in * d_hid_pad + 10 * M_pad * d_in,
            transcendentals=M_pad,
            # weights are re-streamed once per token tile when chunked
            bytes_accessed=int(M_pad * d_in * (x_it + o_it)
                               + (M_pad // tm_eff) * 2 * d_in * d_hid_pad * w_it
                               + (d_hid_pad + 3 * d_in) * 4))

        out = pl.pallas_call(
            functools.partial(_ffn_chunked_kernel, eps=eps),
            out_shape=jax.ShapeDtypeStruct((M_pad, d_in), x.dtype),
            grid_spec=pltpu.PrefetchScalarGridSpec(
                num_scalar_prefetch=0,
                grid=(M_pad // tm_eff, nk),
                in_specs=[
                    pl.BlockSpec((tm_eff, d_in), lambda i, k: (i, 0)),  # x tile
                    pl.BlockSpec((d_in, tk), lambda i, k: (0, k)),      # W1 chunk
                    pl.BlockSpec((1, tk), lambda i, k: (0, k)),         # b1 chunk
                    pl.BlockSpec((tk, d_in), lambda i, k: (k, 0)),      # W2 chunk
                    pl.BlockSpec((1, d_in), lambda i, k: (0, 0)),       # b2
                    pl.BlockSpec((1, d_in), lambda i, k: (0, 0)),       # gamma
                    pl.BlockSpec((1, d_in), lambda i, k: (0, 0)),       # beta
                ],
                out_specs=pl.BlockSpec((tm_eff, d_in), lambda i, k: (i, 0)),
                scratch_shapes=[pltpu.VMEM((tm_eff, d_in), jnp.float32)],
            ),
            compiler_params=pltpu.CompilerParams(
                dimension_semantics=("parallel", "arbitrary"),
                vmem_limit_bytes=budget,
            ),
            cost_estimate=cost,
        )(x2, w1c, b1c, w2c, b2_2, g_2, be_2)

    if M_pad != M:
        out = out[:M]
    return out.reshape(B, S, d_in)


def _reference(x, w1, b1, w2, b2, gamma, beta, eps=1e-6):
    xf = x.astype(jnp.float32)
    h = jnp.maximum(xf @ w1 + b1, 0.0)
    y = h @ w2 + b2
    y = y + xf
    mean = jnp.mean(y, axis=-1, keepdims=True)
    var = jnp.mean((y - mean) ** 2, axis=-1, keepdims=True)
    return ((y - mean) * jax.lax.rsqrt(var + eps)) * gamma + beta


if __name__ == "__main__":
    B, S, d_in, d_hid = 2, 8, 32, 64

    key = jax.random.PRNGKey(0)
    kx, k1, kb1, k2, kb2, k3, k4 = jax.random.split(key, 7)

    x = jax.random.normal(kx, (B, S, d_in), dtype=jnp.float32)

    # nn.Linear default init: U(-1/sqrt(fan_in), 1/sqrt(fan_in)); deterministic.
    lim1 = 1.0 / (d_in ** 0.5)
    w1 = jax.random.uniform(k1, (d_in, d_hid), jnp.float32, -lim1, lim1)
    b1 = jax.random.uniform(kb1, (d_hid,), jnp.float32, -lim1, lim1)
    lim2 = 1.0 / (d_hid ** 0.5)
    w2 = jax.random.uniform(k2, (d_hid, d_in), jnp.float32, -lim2, lim2)
    b2 = jax.random.uniform(kb2, (d_in,), jnp.float32, -lim2, lim2)
    gamma = jnp.ones((d_in,), jnp.float32)   # LayerNorm weight init
    beta = jnp.zeros((d_in,), jnp.float32)   # LayerNorm bias init

    ref = _reference(x, w1, b1, w2, b2, gamma, beta)

    # Exact path (f32 weights, weight-resident): tight check vs JAX reference.
    out_f32 = positionwise_feed_forward(x, w1, b1, w2, b2, gamma, beta)
    out_f32 = jax.block_until_ready(out_f32)
    assert out_f32.shape == (B, S, d_in)
    assert jnp.allclose(out_f32, ref, atol=1e-5, rtol=1e-5), "f32 path mismatch"

    # Fast path: bf16 weights cast ONCE at init; x stays f32 and is cast
    # in-kernel, residual/LayerNorm are f32.
    w1_bf, w2_bf = w1.astype(jnp.bfloat16), w2.astype(jnp.bfloat16)
    out_bf16 = positionwise_feed_forward(x, w1_bf, b1, w2_bf, b2, gamma, beta)
    out_bf16 = jax.block_until_ready(out_bf16)
    assert out_bf16.shape == (B, S, d_in)
    assert jnp.allclose(out_bf16, ref, atol=5e-2, rtol=5e-2), "bf16 path mismatch"

    # Chunked fallback path (forced, nk=2) to make sure it also compiles/runs.
    d_hid2 = 256
    lim1b = 1.0 / (d_in ** 0.5)
    w1b = jax.random.uniform(k3, (d_in, d_hid2), jnp.float32, -lim1b, lim1b)
    b1b = jnp.zeros((d_hid2,), jnp.float32)
    lim2b = 1.0 / (d_hid2 ** 0.5)
    w2b = jax.random.uniform(k4, (d_hid2, d_in), jnp.float32, -lim2b, lim2b)
    ref2 = _reference(x, w1b, b1b, w2b, b2, gamma, beta)
    out_chunked = positionwise_feed_forward(x, w1b, b1b, w2b, b2, gamma, beta,
                                            force_chunked=True,
                                            max_hidden_tile=128)
    out_chunked = jax.block_until_ready(out_chunked)
    assert jnp.allclose(out_chunked, ref2, atol=1e-5, rtol=1e-5), "chunked mismatch"

    print("KERNEL_OK")
</pallas_src>

<mosaic_0001>
module attributes {stable_mosaic.version = 11 : i64} {
  func.func @_ffn_resident_kernel(%arg0: i32, %arg1: memref<16x32xf32, #tpu.memory_space<vmem>>, %arg2: memref<32x64xf32, #tpu.memory_space<vmem>>, %arg3: memref<1x64xf32, #tpu.memory_space<vmem>>, %arg4: memref<64x32xf32, #tpu.memory_space<vmem>>, %arg5: memref<1x32xf32, #tpu.memory_space<vmem>>, %arg6: memref<1x32xf32, #tpu.memory_space<vmem>>, %arg7: memref<1x32xf32, #tpu.memory_space<vmem>>, %arg8: memref<16x32xf32, #tpu.memory_space<vmem>>) attributes {dimension_semantics = [#tpu.dimension_semantics<parallel>], iteration_bounds = array<i64: 1>, scalar_prefetch = 0 : i64, scratch_operands = 0 : i64, tpu.core_type = #tpu.core_type<tc>, window_params = [{transform_indices = @transform_0, window_bounds = array<i64: 16, 32>}, {pipeline_mode = #tpu.pipeline_mode<synchronous>, transform_indices = @transform_1, window_bounds = array<i64: 32, 64>}, {pipeline_mode = #tpu.pipeline_mode<synchronous>, transform_indices = @transform_2, window_bounds = array<i64: 1, 64>}, {pipeline_mode = #tpu.pipeline_mode<synchronous>, transform_indices = @transform_3, window_bounds = array<i64: 64, 32>}, {pipeline_mode = #tpu.pipeline_mode<synchronous>, transform_indices = @transform_4, window_bounds = array<i64: 1, 32>}, {pipeline_mode = #tpu.pipeline_mode<synchronous>, transform_indices = @transform_5, window_bounds = array<i64: 1, 32>}, {pipeline_mode = #tpu.pipeline_mode<synchronous>, transform_indices = @transform_6, window_bounds = array<i64: 1, 32>}, {transform_indices = @transform_7, window_bounds = array<i64: 16, 32>}]} {
    %c0 = arith.constant 0 : index
    %c0_0 = arith.constant 0 : index
    %0 = vector.load %arg1[%c0, %c0_0] : memref<16x32xf32, #tpu.memory_space<vmem>>, vector<16x32xf32>
    %c0_1 = arith.constant 0 : index
    %c0_2 = arith.constant 0 : index
    %1 = vector.load %arg2[%c0_1, %c0_2] : memref<32x64xf32, #tpu.memory_space<vmem>>, vector<32x64xf32>
    %cst = arith.constant dense<0.000000e+00> : vector<16x64xf32>
    %2 = tpu.matmul %0, %1, %cst {dimension_numbers = #tpu.dot_dimension_numbers<[1], [0], [0], [1], [0, 0, 1, 1], [], []>} : vector<16x32xf32>, vector<32x64xf32>, vector<16x64xf32> -> vector<16x64xf32>
    %c0_3 = arith.constant 0 : index
    %c0_4 = arith.constant 0 : index
    %3 = vector.load %arg3[%c0_3, %c0_4] : memref<1x64xf32, #tpu.memory_space<vmem>>, vector<1x64xf32>
    %4 = vector.broadcast %3 : vector<1x64xf32> to vector<16x64xf32>
    %5 = arith.addf %2, %4 : vector<16x64xf32>
    %cst_5 = arith.constant 0.000000e+00 : f32
    %6 = vector.broadcast %cst_5 : f32 to vector<16x64xf32>
    %7 = arith.maximumf %5, %6 : vector<16x64xf32>
    %c0_6 = arith.constant 0 : index
    %c0_7 = arith.constant 0 : index
    %8 = vector.load %arg4[%c0_6, %c0_7] : memref<64x32xf32, #tpu.memory_space<vmem>>, vector<64x32xf32>
    %cst_8 = arith.constant dense<0.000000e+00> : vector<16x32xf32>
    %9 = tpu.matmul %7, %8, %cst_8 {dimension_numbers = #tpu.dot_dimension_numbers<[1], [0], [0], [1], [0, 0, 1, 1], [], []>} : vector<16x64xf32>, vector<64x32xf32>, vector<16x32xf32> -> vector<16x32xf32>
    %c0_9 = arith.constant 0 : index
    %c0_10 = arith.constant 0 : index
    %10 = vector.load %arg5[%c0_9, %c0_10] : memref<1x32xf32, #tpu.memory_space<vmem>>, vector<1x32xf32>
    %11 = vector.broadcast %10 : vector<1x32xf32> to vector<16x32xf32>
    %12 = arith.addf %9, %11 : vector<16x32xf32>
    %13 = arith.addf %12, %0 : vector<16x32xf32>
    %cst_11 = arith.constant dense<0.000000e+00> : vector<16xf32>
    %14 = vector.multi_reduction <add>, %13, %cst_11 [1] : vector<16x32xf32> to vector<16xf32>
    %15 = vector.shape_cast %14 : vector<16xf32> to vector<16x1xf32>
    %cst_12 = arith.constant 3.200000e+01 : f32
    %16 = vector.broadcast %cst_12 : f32 to vector<16x1xf32>
    %17 = arith.divf %15, %16 : vector<16x1xf32>
    %18 = vector.broadcast %17 : vector<16x1xf32> to vector<16x32xf32>
    %19 = arith.subf %13, %18 : vector<16x32xf32>
    %20 = arith.mulf %19, %19 : vector<16x32xf32>
    %cst_13 = arith.constant dense<0.000000e+00> : vector<16xf32>
    %21 = vector.multi_reduction <add>, %20, %cst_13 [1] : vector<16x32xf32> to vector<16xf32>
    %22 = vector.shape_cast %21 : vector<16xf32> to vector<16x1xf32>
    %cst_14 = arith.constant 3.200000e+01 : f32
    %23 = vector.broadcast %cst_14 : f32 to vector<16x1xf32>
    %24 = arith.divf %22, %23 : vector<16x1xf32>
    %cst_15 = arith.constant 9.99999997E-7 : f32
    %25 = vector.broadcast %cst_15 : f32 to vector<16x1xf32>
    %26 = arith.addf %24, %25 : vector<16x1xf32>
    %27 = math.rsqrt %26 : vector<16x1xf32>
    %28 = vector.broadcast %27 : vector<16x1xf32> to vector<16x32xf32>
    %29 = arith.mulf %19, %28 : vector<16x32xf32>
    %c0_16 = arith.constant 0 : index
    %c0_17 = arith.constant 0 : index
    %30 = vector.load %arg6[%c0_16, %c0_17] : memref<1x32xf32, #tpu.memory_space<vmem>>, vector<1x32xf32>
    %31 = vector.broadcast %30 : vector<1x32xf32> to vector<16x32xf32>
    %32 = arith.mulf %29, %31 : vector<16x32xf32>
    %c0_18 = arith.constant 0 : index
    %c0_19 = arith.constant 0 : index
    %33 = vector.load %arg7[%c0_18, %c0_19] : memref<1x32xf32, #tpu.memory_space<vmem>>, vector<1x32xf32>
    %34 = vector.broadcast %33 : vector<1x32xf32> to vector<16x32xf32>
    %35 = arith.addf %32, %34 : vector<16x32xf32>
    %c0_20 = arith.constant 0 : index
    %c0_21 = arith.constant 0 : index
    %36 = vector.load %arg8[%c0_20, %c0_21] : memref<16x32xf32, #tpu.memory_space<vmem>>, vector<16x32xf32>
    tpu.vector_store %arg8[%c0_20, %c0_21], %35 {strides = array<i32>} : memref<16x32xf32, #tpu.memory_space<vmem>>, vector<16x32xf32>,
    return
  }
  func.func @transform_0(%arg0: i32) -> (i32, i32) {
    %c0_i32 = arith.constant 0 : i32
    %c0_i32_0 = arith.constant 0 : i32
    return %arg0, %c0_i32 : i32, i32
  }
  func.func @transform_1(%arg0: i32) -> (i32, i32) {
    %c0_i32 = arith.constant 0 : i32
    %c0_i32_0 = arith.constant 0 : i32
    %c0_i32_1 = arith.constant 0 : i32
    return %c0_i32, %c0_i32_0 : i32, i32
  }
  func.func @transform_2(%arg0: i32) -> (i32, i32) {
    %c0_i32 = arith.constant 0 : i32
    %c0_i32_0 = arith.constant 0 : i32
    %c0_i32_1 = arith.constant 0 : i32
    return %c0_i32, %c0_i32_0 : i32, i32
  }
  func.func @transform_3(%arg0: i32) -> (i32, i32) {
    %c0_i32 = arith.constant 0 : i32
    %c0_i32_0 = arith.constant 0 : i32
    %c0_i32_1 = arith.constant 0 : i32
    return %c0_i32, %c0_i32_0 : i32, i32
  }
  func.func @transform_4(%arg0: i32) -> (i32, i32) {
    %c0_i32 = arith.constant 0 : i32
    %c0_i32_0 = arith.constant 0 : i32
    %c0_i32_1 = arith.constant 0 : i32
    return %c0_i32, %c0_i32_0 : i32, i32
  }
  func.func @transform_5(%arg0: i32) -> (i32, i32) {
    %c0_i32 = arith.constant 0 : i32
    %c0_i32_0 = arith.constant 0 : i32
    %c0_i32_1 = arith.constant 0 : i32
    return %c0_i32, %c0_i32_0 : i32, i32
  }
  func.func @transform_6(%arg0: i32) -> (i32, i32) {
    %c0_i32 = arith.constant 0 : i32
    %c0_i32_0 = arith.constant 0 : i32
    %c0_i32_1 = arith.constant 0 : i32
    return %c0_i32, %c0_i32_0 : i32, i32
  }
  func.func @transform_7(%arg0: i32) -> (i32, i32) {
    %c0_i32 = arith.constant 0 : i32
    %c0_i32_0 = arith.constant 0 : i32
    return %arg0, %c0_i32 : i32, i32
  }
}

</mosaic_0001>

<llo_original>
// kernel: tpu_custom_call.1
$region0: #{tpu_custom_call.1}
  #allocation0 [shape = 'u32[]', space=smem, size = 0x4, offset = 0x4, fixed_abs, tag = 'smem constant byte address 0x4 - core index']
  #allocation1 [shape = 'u32[144,128]{1,0:T(1,128)}', space=vmem, size = 0x12000, scoped, tag = 'internal scratch']
  %s0 = inlined_call_operand.vmem [shape: f32[16,32], index: 0, kind: input, shape index: {}]
  %s1 = inlined_call_operand.vmem [shape: f32[32,64], index: 1, kind: input, shape index: {}]
  %s2 = inlined_call_operand.vmem [shape: f32[1,64], index: 2, kind: input, shape index: {}]
  %s3 = inlined_call_operand.vmem [shape: f32[64,32], index: 3, kind: input, shape index: {}]
  %s4 = inlined_call_operand.vmem [shape: f32[1,32], index: 4, kind: input, shape index: {}]
  %s5 = inlined_call_operand.vmem [shape: f32[1,32], index: 5, kind: input, shape index: {}]
  %s6 = inlined_call_operand.vmem [shape: f32[1,32], index: 6, kind: input, shape index: {}]
  %s7 = inlined_call_operand.hbm [shape: f32[16,32], index: 7, kind: output, shape index: {}]
  %s8 = sld [smem:[#allocation0]]
  $region38: #{tpu_custom_call.1} parent=0
    _
  %s10 = ssub.s32 1, %s8
  %s11 = scalar_select 0, %s10, %s8
  $region1: #{tpu_custom_call.1} parent=0
    #allocation2 [shape = 'u8[8192]{0}', space=vmem, size = 0x2000, scoped, tag = 'output window, operand 0, single buffered']
    #allocation3 [shape = 's32[1]{0}', space=sflag, size = 0x4, scoped, tag = 'scoped memory for tpu_custom_call.1']
    %12 = vsyncpa [#allocation3], 0
    // Predicated region
    $region2: #{tpu_custom_call.1} parent=1 // pred_check
      _
    $region3: #{tpu_custom_call.1} parent=1 // pred_check_branch
      %14 = sbr.rel (0) target = $region5
    $region4: #{tpu_custom_call.1} parent=1 // pred_region
      _
    $region5: #{tpu_custom_call.1} parent=1 // pred_fallthru
      _
    // Predicated region
    $region6: #{tpu_custom_call.1} parent=1 // pred_check
      _
    $region7: #{tpu_custom_call.1} parent=1 // pred_check_branch
      %16 = sbr.rel (0) target = $region9
    $region8: #{tpu_custom_call.1} parent=1 // pred_region
      _
    $region9: #{tpu_custom_call.1} parent=1 // pred_fallthru
      _
    // Predicated region
    $region10: #{tpu_custom_call.1} parent=1 // pred_check
      _
    $region11: #{tpu_custom_call.1} parent=1 // pred_check_branch
      %18 = sbr.rel (0) target = $region13
    $region12: #{tpu_custom_call.1} parent=1 // pred_region
      _
    $region13: #{tpu_custom_call.1} parent=1 // pred_fallthru
      _
    // Predicated region
    $region14: #{tpu_custom_call.1} parent=1 // pred_check
      _
    $region15: #{tpu_custom_call.1} parent=1 // pred_check_branch
      %20 = sbr.rel (0) target = $region17
    $region16: #{tpu_custom_call.1} parent=1 // pred_region
      _
    $region17: #{tpu_custom_call.1} parent=1 // pred_fallthru
      _
    // Predicated region
    $region18: #{tpu_custom_call.1} parent=1 // pred_check
      _
    $region19: #{tpu_custom_call.1} parent=1 // pred_check_branch
      %22 = sbr.rel (0) target = $region21
    $region20: #{tpu_custom_call.1} parent=1 // pred_region
      _
    $region21: #{tpu_custom_call.1} parent=1 // pred_fallthru
      _
    // Predicated region
    $region22: #{tpu_custom_call.1} parent=1 // pred_check
      _
    $region23: #{tpu_custom_call.1} parent=1 // pred_check_branch
      %24 = sbr.rel (0) target = $region25
    $region24: #{tpu_custom_call.1} parent=1 // pred_region
      _
    $region25: #{tpu_custom_call.1} parent=1 // pred_fallthru
      _
    // Predicated region
    $region26: #{tpu_custom_call.1} parent=1 // pred_check
      _
    $region27: #{tpu_custom_call.1} parent=1 // pred_check_branch
      %26 = sbr.rel (0) target = $region29
    $region28: #{tpu_custom_call.1} parent=1 // pred_region
      _
    $region29: #{tpu_custom_call.1} parent=1 // pred_fallthru
      _
    %v27 = vld [vmem:[%s0] sm:$0xff]
    %v28 = vld [vmem:[%s0 + $0x8] sm:$0xff]
    %v29 = vld [vmem:[%s1] sm:$0xff]
    %v30 = vld [vmem:[%s1 + $0x8] sm:$0xff]
    %v31 = vld [vmem:[%s1 + $0x10] sm:$0xff]
    %v32 = vld [vmem:[%s1 + $0x18] sm:$0xff]
    %v33 = vld [vmem:[%s2] sm:$0x1]
    %v35 = vlaneseq
    %v36 = vshrl.u32 %v35, 7
    %v37 = vsub.s32 0, %v36
    %v38 = vrot.slane %v33, %v37
    %vm40 = vcmask 261120
    %v42 = vsel %vm40, %v27, 0
    %v45 = vsel %vm40, %v28, 0
    %47 = vmatprep.subr.mxu0 0.0
    %48 = vmatpush1.msra.mxu0 %v29
    %49 = vmatprep.subr.mxu0 0.0
    %50 = vmatpush1.msra.mxu0 %v30
    %51 = vmatprep.subr.mxu0 0.0
    %52 = vmatpush1.msra.mxu0 %v31
    %53 = vmatprep.subr.mxu0 0.0
    %54 = vmatpush1.msra.mxu0 %v32
    %55 = vmatprep.subr.mxu0 0.0
    %56 = vmatpush1.msra.mxu0 0.0
    %57 = vmatprep.subr.mxu0 0.0
    %58 = vmatpush1.msra.mxu0 0.0
    %59 = vmatprep.subr.mxu0 0.0
    %60 = vmatpush1.msra.mxu0 0.0
    %61 = vmatprep.subr.mxu0 0.0
    %62 = vmatpush1.msra.mxu0 0.0
    %63 = vmatprep.subr.mxu0 0.0
    %64 = vmatpush1.msra.mxu0 0.0
    %65 = vmatprep.subr.mxu0 0.0
    %66 = vmatpush1.msra.mxu0 0.0
    %67 = vmatprep.subr.mxu0 0.0
    %68 = vmatpush1.msra.mxu0 0.0
    %69 = vmatprep.subr.mxu0 0.0
    %70 = vmatpush1.msra.mxu0 0.0
    %71 = vmatprep.subr.mxu0 0.0
    %72 = vmatpush1.msra.mxu0 0.0
    %73 = vmatprep.subr.mxu0 0.0
    %74 = vmatpush1.msra.mxu0 0.0
    %75 = vmatprep.subr.mxu0 0.0
    %76 = vmatpush1.msra.mxu0 0.0
    %77 = vmatprep.subr.mxu0 0.0
    %78 = vmatpush1.msra.mxu0 0.0
    %79 = vmatprep.subr.mxu0 0.0
    %80 = vmatpush1.msra.mxu0 0.0
    %81 = vmatprep.subr.mxu0 0.0
    %82 = vmatpush1.msra.mxu0 0.0
    %83 = vmatprep.subr.mxu0 0.0
    %84 = vmatpush1.msra.mxu0 0.0
    %85 = vmatprep.subr.mxu0 0.0
    %86 = vmatpush1.msra.mxu0 0.0
    %87 = vmatprep.subr.mxu0 0.0
    %88 = vmatpush1.msra.mxu0 0.0
    %89 = vmatprep.subr.mxu0 0.0
    %90 = vmatpush1.msra.mxu0 0.0
    %91 = vmatprep.subr.mxu0 0.0
    %92 = vmatpush1.msra.mxu0 0.0
    %93 = vmatprep.subr.mxu0 0.0
    %94 = vmatpush1.msra.mxu0 0.0
    %95 = vmatprep.subr.mxu0 0.0
    %96 = vmatpush1.msra.mxu0 0.0
    %97 = vmatprep.subr.mxu0 0.0
    %98 = vmatpush1.msra.mxu0 0.0
    %99 = vmatprep.subr.mxu0 0.0
    %100 = vmatpush1.msra.mxu0 0.0
    %101 = vmatprep.subr.mxu0 0.0
    %102 = vmatpush1.msra.mxu0 0.0
    %103 = vmatprep.subr.mxu0 0.0
    %104 = vmatpush1.msra.mxu0 0.0
    %105 = vmatprep.subr.mxu0 0.0
    %106 = vmatpush1.msra.mxu0 0.0
    %107 = vmatprep.subr.mxu0 0.0
    %108 = vmatpush1.msra.mxu0 0.0
    %109 = vmatprep.subr.mxu0 0.0
    %110 = vmatpush1.msra.mxu0 0.0
    %111 = vmatprep.mubr.f32.mxu0 0.0
    %112 = vmatmul.mubr.f32.gmra.mrb[0].mxu0 %v42
    %v113 = vpop.f32.mrb[0].mxu0
    %v114 = vadd.f32 %v38, %v113
    %v115 = vpop.f32.mrb[0].mxu0
    %116 = vmatprep.mubr.f32.mxu0 0.0
    %117 = vmatmul.mubr.f32.gmra.mrb[0].mxu0 %v45
    %v118 = vpop.f32.mrb[0].mxu0
    %v119 = vadd.f32 %v38, %v118
    %v120 = vpop.f32.mrb[0].mxu0
    %121 = vdwg.mxu0
    %v122 = vmax.f32 %v114, 0.0
    %v123 = vmax.f32 %v119, 0.0
    %v124 = vld [vmem:[%s3] sm:$0xff]
    %v125 = vld [vmem:[%s3 + $0x8] sm:$0xff]
    %v126 = vld [vmem:[%s3 + $0x10] sm:$0xff]
    %v127 = vld [vmem:[%s3 + $0x18] sm:$0xff]
    %v128 = vld [vmem:[%s3 + $0x20] sm:$0xff]
    %v129 = vld [vmem:[%s3 + $0x28] sm:$0xff]
    %v130 = vld [vmem:[%s3 + $0x30] sm:$0xff]
    %v131 = vld [vmem:[%s3 + $0x38] sm:$0xff]
    %v132 = vld [vmem:[%s4] sm:$0x1]
    %v134 = vlaneseq
    %v135 = vshrl.u32 %v134, 7
    %v136 = vsub.s32 0, %v135
    %v137 = vrot.slane %v132, %v136
    %vm139 = vcmask 523264
    %v141 = vsel %vm139, %v122, 0
    %v144 = vsel %vm139, %v123, 0
    %146 = vmatprep.subr.mxu0 0.0
    %147 = vmatpush1.msra.mxu0 %v124
    %148 = vmatprep.subr.mxu0 0.0
    %149 = vmatpush1.msra.mxu0 %v125
    %150 = vmatprep.subr.mxu0 0.0
    %151 = vmatpush1.msra.mxu0 %v126
    %152 = vmatprep.subr.mxu0 0.0
    %153 = vmatpush1.msra.mxu0 %v127
    %154 = vmatprep.subr.mxu0 0.0
    %155 = vmatpush1.msra.mxu0 %v128
    %156 = vmatprep.subr.mxu0 0.0
    %157 = vmatpush1.msra.mxu0 %v129
    %158 = vmatprep.subr.mxu0 0.0
    %159 = vmatpush1.msra.mxu0 %v130
    %160 = vmatprep.subr.mxu0 0.0
    %161 = vmatpush1.msra.mxu0 %v131
    %162 = vmatprep.subr.mxu0 0.0
    %163 = vmatpush1.msra.mxu0 0.0
    %164 = vmatprep.subr.mxu0 0.0
    %165 = vmatpush1.msra.mxu0 0.0
    %166 = vmatprep.subr.mxu0 0.0
    %167 = vmatpush1.msra.mxu0 0.0
    %168 = vmatprep.subr.mxu0 0.0
    %169 = vmatpush1.msra.mxu0 0.0
    %170 = vmatprep.subr.mxu0 0.0
    %171 = vmatpush1.msra.mxu0 0.0
    %172 = vmatprep.subr.mxu0 0.0
    %173 = vmatpush1.msra.mxu0 0.0
    %174 = vmatprep.subr.mxu0 0.0
    %175 = vmatpush1.msra.mxu0 0.0
    %176 = vmatprep.subr.mxu0 0.0
    %177 = vmatpush1.msra.mxu0 0.0
    %178 = vmatprep.subr.mxu0 0.0
    %179 = vmatpush1.msra.mxu0 0.0
    %180 = vmatprep.subr.mxu0 0.0
    %181 = vmatpush1.msra.mxu0 0.0
    %182 = vmatprep.subr.mxu0 0.0
    %183 = vmatpush1.msra.mxu0 0.0
    %184 = vmatprep.subr.mxu0 0.0
    %185 = vmatpush1.msra.mxu0 0.0
    %186 = vmatprep.subr.mxu0 0.0
    %187 = vmatpush1.msra.mxu0 0.0
    %188 = vmatprep.subr.mxu0 0.0
    %189 = vmatpush1.msra.mxu0 0.0
    %190 = vmatprep.subr.mxu0 0.0
    %191 = vmatpush1.msra.mxu0 0.0
    %192 = vmatprep.subr.mxu0 0.0
    %193 = vmatpush1.msra.mxu0 0.0
    %194 = vmatprep.subr.mxu0 0.0
    %195 = vmatpush1.msra.mxu0 0.0
    %196 = vmatprep.subr.mxu0 0.0
    %197 = vmatpush1.msra.mxu0 0.0
    %198 = vmatprep.subr.mxu0 0.0
    %199 = vmatpush1.msra.mxu0 0.0
    %200 = vmatprep.subr.mxu0 0.0
    %201 = vmatpush1.msra.mxu0 0.0
    %202 = vmatprep.subr.mxu0 0.0
    %203 = vmatpush1.msra.mxu0 0.0
    %204 = vmatprep.subr.mxu0 0.0
    %205 = vmatpush1.msra.mxu0 0.0
    %206 = vmatprep.subr.mxu0 0.0
    %207 = vmatpush1.msra.mxu0 0.0
    %208 = vmatprep.subr.mxu0 0.0
    %209 = vmatpush1.msra.mxu0 0.0
    %210 = vmatprep.mubr.f32.mxu0 0.0
    %211 = vmatmul.mubr.f32.gmra.mrb[0].mxu0 %v141
    %v212 = vpop.f32.mrb[0].mxu0
    %v213 = vadd.f32 %v137, %v212
    %v214 = vpop.f32.mrb[0].mxu0
    %215 = vmatprep.mubr.f32.mxu0 0.0
    %216 = vmatmul.mubr.f32.gmra.mrb[0].mxu0 %v144
    %v217 = vpop.f32.mrb[0].mxu0
    %v218 = vadd.f32 %v137, %v217
    %v219 = vpop.f32.mrb[0].mxu0
    %220 = vdwg.mxu0
    %v221 = vadd.f32 %v213, %v27
    %v222 = vadd.f32 %v218, %v28
    %v223 = vsel %vm40, %v221, 0.0
    %224 = vadd.xlane.f32.xlu0 %v223
    %v225 = vpop.xlane.xlu0 %224
    %v226 = vsel %vm40, %v222, 0.0
    %227 = vadd.xlane.f32.xlu0 %v226
    %v228 = vpop.xlane.xlu0 %227
    %v229 = vrcp.pop 32.0
    %v230 = vmul.f32 %v225, %v229
    %v231 = vmul.f32 %v228, %v229
    %v232 = vsub.f32 %v221, %v230
    %v233 = vsub.f32 %v222, %v231
    %v234 = vmul.f32 %v232, %v232
    %v235 = vmul.f32 %v233, %v233
    %v236 = vsel %vm40, %v234, 0.0
    %237 = vadd.xlane.f32.xlu0 %v236
    %v238 = vpop.xlane.xlu0 %237
    %v239 = vsel %vm40, %v235, 0.0
    %240 = vadd.xlane.f32.xlu0 %v239
    %v241 = vpop.xlane.xlu0 %240
    %v242 = vmul.f32 %v238, %v229
    %v243 = vmul.f32 %v241, %v229
    %v244 = vadd.f32 %v242, 1e-06
    %v245 = vadd.f32 %v243, 1e-06
    %v246 = vrsqrt.pop %v244
    %v247 = vrsqrt.pop %v245
    %v248 = vmul.f32 %v232, %v246
    %v249 = vmul.f32 %v233, %v247
    %v250 = vld [vmem:[%s5] sm:$0x1]
    %v252 = vlaneseq
    %v253 = vshrl.u32 %v252, 7
    %v254 = vsub.s32 0, %v253
    %v255 = vrot.slane %v250, %v254
    %v257 = vmul.f32 %v248, %v255
    %v258 = vmul.f32 %v249, %v255
    %v259 = vld [vmem:[%s6] sm:$0x1]
    %v261 = vlaneseq
    %v262 = vshrl.u32 %v261, 7
    %v263 = vsub.s32 0, %v262
    %v264 = vrot.slane %v259, %v263
    %v266 = vadd.f32 %v257, %v264
    %v267 = vadd.f32 %v258, %v264
    %268 = vst.msk [vmem:[#allocation2] sm:$0xff] %vm40, %v266
    %269 = vst.msk [vmem:[#allocation2 + $0x8] sm:$0xff] %vm40, %v267
    // Predicated region
    $region30: #{tpu_custom_call.1} parent=1 // pred_check
      _
    $region31: #{tpu_custom_call.1} parent=1 // pred_check_branch
      %271 = sbr.rel (0) target = $region33
    $region32: #{tpu_custom_call.1} parent=1 // pred_region
      %s273 = ssub.s32 256, 256
      %274 = vsyncadd [#allocation3], %s273
      %s275 = sshll.u32 [#allocation2], 4
      %s276 = int_to_ptr.vmem [resolvable:$true] %s275
      %281 = dma.vmem_to_hbm [thread:$0]  %s276, 256, %s7, [#allocation3], 128, 128, 8
    $region33: #{tpu_custom_call.1} parent=1 // pred_fallthru
      _
    // Predicated region
    $region34: #{tpu_custom_call.1} parent=1 // pred_check
      _
    $region35: #{tpu_custom_call.1} parent=1 // pred_check_branch
      %283 = sbr.rel (0) target = $region37
    $region36: #{tpu_custom_call.1} parent=1 // pred_region
      %284 = dma.done [#allocation3], 256
    $region37: #{tpu_custom_call.1} parent=1 // pred_fallthru
      _
    %285 = vsyncpa [#allocation3], 1

</llo_original>
